<compile_context>
chip_gen: v7x
topology: tpu7x:2x2x1
jax: 0.10.0
libtpu: 0.0.40
codegen_flags: <defaults>
</compile_context>

<pallas_src>
import functools

import jax
import jax.numpy as jnp
from jax import lax
from jax.experimental import pallas as pl
from jax.experimental.pallas import tpu as pltpu

KSIZE = 3
PAD = 1
BN_EPS = 1e-5
LEAKY_SLOPE = 0.1

LANE = 128
SUBLANE = 8


def _round_up(x, m):
    return (x + m - 1) // m * m


def _vmem_limit_bytes():
    # Generation-aware scoped-VMEM limit: ~3/4 of physical, capped at 100 MiB
    # (128 MiB VMEM on v5e/v6e, 64 MiB per TensorCore on v7x).
    try:
        cap = int(pltpu.get_tpu_info().vmem_capacity_bytes)
        return max(32 * 1024 * 1024, min(cap * 3 // 4, 100 * 1024 * 1024))
    except Exception:
        return 48 * 1024 * 1024


def _choose_cout_tile(cout):
    # Tile the output-channel (sublane) axis only when resident weights would
    # otherwise stress VMEM; small Cout stays untiled -> zero channel padding.
    if cout > 256 and cout % 256 == 0:
        return 256, cout // 256
    return cout, 1


def _choose_m_tile(m, n, k, t_co, in_itemsize, vmem_limit):
    # Largest lane-aligned row tile that (a) fits comfortably in VMEM together
    # with resident weights and double-buffered patch/output tiles and
    # (b) leaves >= 2 grid programs when possible (2 TensorCores on v7x).
    budget = int(vmem_limit * 0.6)
    for tm in (1024, 512, 256, 128):
        if m < tm:
            continue
        footprint = (2 * k * tm * in_itemsize      # patch tile, double-buffered
                     + 2 * t_co * tm * 4           # f32 output tile, double-buffered
                     + t_co * k * in_itemsize      # resident weights (single buffer)
                     + t_co * 4)                   # bias
        if footprint > budget:
            continue
        if n * ((m + tm - 1) // tm) >= 2:
            return tm
    return LANE if m >= LANE else _round_up(m, LANE)


def _bspec(block_shape, index_map, buffers=None):
    # BlockSpec helper that requests N-deep buffering when supported.
    if buffers is not None:
        try:
            return pl.BlockSpec(block_shape, index_map,
                                pipeline_mode=pl.Buffered(buffers))
        except TypeError:  # older BlockSpec without pipeline_mode kwarg
            pass
    return pl.BlockSpec(block_shape, index_map)


def _conv_bn_lrelu_kernel(p_ref, w_ref, b_ref, o_ref, *, precision):
    # p_ref: (K, TM)    im2col patch columns for this row tile (compute dtype)
    # w_ref: (TCo, K)   conv weights with BN scale folded in   (compute dtype)
    # b_ref: (TCo, 1)   f32 folded conv-bias + BN shift
    # o_ref: (TCo, TM)  f32 output tile (columns are h*W + w, NCHW row-major)
    acc = jnp.dot(w_ref[...], p_ref[...],
                  preferred_element_type=jnp.float32, precision=precision)
    y = acc + b_ref[...]                                  # conv bias + BN (folded)
    o_ref[...] = jnp.maximum(y, LEAKY_SLOPE * y).astype(o_ref.dtype)  # LeakyReLU


@functools.partial(jax.jit, static_argnames=("compute_dtype",))
def conv_bn_leakyrelu(x_nchw, w_oihw, conv_b, gamma, beta, run_mean, run_var,
                      *, compute_dtype=jnp.bfloat16):
    """Forward pass equivalent to ConvBnLeakyrelu.forward (inference-mode BN).

    x_nchw: (N, Cin, H, W) float32.  Returns (N, Cout, H, W) float32.
    """
    N, Cin, H, W = x_nchw.shape
    Cout = w_oihw.shape[0]
    K = KSIZE * KSIZE * Cin
    M = H * W

    in_itemsize = jnp.dtype(compute_dtype).itemsize
    vmem_limit = _vmem_limit_bytes()
    TCo, n_co = _choose_cout_tile(Cout)
    TM = _choose_m_tile(M, N, K, TCo, in_itemsize, vmem_limit)
    Mp = _round_up(M, TM)

    # ---- glue (plain XLA, fused under jit): im2col + parameter folding ------
    # Patches stay in NCHW orientation and UNPADDED along K: (N, K, Mp) with
    # K ordered (kh, kw, cin) and M = h*W + w on the lane axis.
    x = x_nchw.astype(compute_dtype)
    x_pad = jnp.pad(x, ((0, 0), (0, 0), (PAD, PAD), (PAD, PAD)))
    taps = [x_pad[:, :, kh:kh + H, kw:kw + W]
            for kh in range(KSIZE) for kw in range(KSIZE)]
    patches = jnp.stack(taps, axis=1).reshape(N, K, M)    # (N, 9*Cin, H*W)
    if Mp != M:
        patches = jnp.pad(patches, ((0, 0), (0, 0), (0, Mp - M)))

    # Fold inference-mode BN: scale into the weight columns, shift into a bias.
    scale = (gamma / jnp.sqrt(run_var + BN_EPS)).astype(jnp.float32)
    bias = ((conv_b - run_mean) * scale + beta).astype(jnp.float32).reshape(Cout, 1)
    w2 = jnp.transpose(w_oihw, (0, 2, 3, 1)).reshape(Cout, K).astype(jnp.float32)
    w2 = (w2 * scale[:, None]).astype(compute_dtype)      # (Cout, K)

    precision = (lax.Precision.HIGHEST
                 if jnp.dtype(compute_dtype) == jnp.dtype(jnp.float32) else None)
    kernel = functools.partial(_conv_bn_lrelu_kernel, precision=precision)

    grid = (N, n_co, Mp // TM)

    cost = pl.CostEstimate(
        flops=2 * N * Mp * K * Cout,
        transcendentals=0,
        bytes_accessed=int(N * K * Mp * in_itemsize       # patch slab read
                           + Cout * K * in_itemsize       # weights
                           + Cout * 4                     # bias
                           + N * Cout * Mp * 4))          # f32 output write

    out = pl.pallas_call(
        kernel,
        out_shape=jax.ShapeDtypeStruct((N, Cout, Mp), jnp.float32),
        grid_spec=pltpu.PrefetchScalarGridSpec(
            num_scalar_prefetch=0,
            grid=grid,
            in_specs=[
                _bspec((None, K, TM), lambda n, co, m: (n, 0, m)),
                _bspec((TCo, K), lambda n, co, m: (co, 0), buffers=1),
                _bspec((TCo, 1), lambda n, co, m: (co, 0), buffers=1),
            ],
            out_specs=pl.BlockSpec((None, TCo, TM), lambda n, co, m: (n, co, m)),
        ),
        compiler_params=pltpu.CompilerParams(
            dimension_semantics=("parallel", "parallel", "parallel"),
            vmem_limit_bytes=vmem_limit,
        ),
        cost_estimate=cost,
    )(patches, w2, bias)

    out = out[:, :, :M] if Mp != M else out
    return out.reshape(N, Cout, H, W)                     # already NCHW


def reference(x_nchw, w_oihw, conv_b, gamma, beta, run_mean, run_var):
    y = lax.conv_general_dilated(
        x_nchw, w_oihw, window_strides=(1, 1),
        padding=((PAD, PAD), (PAD, PAD)),
        dimension_numbers=("NCHW", "OIHW", "NCHW"),
        precision=lax.Precision.HIGHEST)
    y = y + conv_b[None, :, None, None]
    scale = gamma / jnp.sqrt(run_var + BN_EPS)
    y = (y - run_mean[None, :, None, None]) * scale[None, :, None, None] \
        + beta[None, :, None, None]
    return jnp.where(y >= 0, y, LEAKY_SLOPE * y)


if __name__ == "__main__":
    key = jax.random.PRNGKey(0)
    N, Cin, Cout, H, W = 2, 4, 8, 16, 16

    k1, k2, k3, k4, k5, k6 = jax.random.split(key, 6)
    x = jax.random.normal(k1, (N, Cin, H, W), dtype=jnp.float32)

    # Deterministic parameter init (shapes per nn.Conv2d / nn.BatchNorm2d).
    fan_in = Cin * KSIZE * KSIZE
    bound = 1.0 / jnp.sqrt(fan_in)
    w = jax.random.uniform(k2, (Cout, Cin, KSIZE, KSIZE),
                           minval=-bound, maxval=bound, dtype=jnp.float32)
    conv_b = jax.random.uniform(k3, (Cout,), minval=-bound, maxval=bound,
                                dtype=jnp.float32)
    gamma = jnp.ones((Cout,), jnp.float32) + 0.1 * jax.random.normal(k4, (Cout,))
    beta = 0.1 * jax.random.normal(k5, (Cout,), dtype=jnp.float32)
    run_mean = 0.1 * jax.random.normal(k6, (Cout,), dtype=jnp.float32)
    run_var = jnp.abs(jnp.ones((Cout,), jnp.float32))

    ref = reference(x, w, conv_b, gamma, beta, run_mean, run_var)

    # 1) f32 matmul path (precision=HIGHEST): strict check vs the XLA reference.
    out_f32 = conv_bn_leakyrelu(x, w, conv_b, gamma, beta, run_mean, run_var,
                                compute_dtype=jnp.float32)
    out_f32 = jax.block_until_ready(out_f32)
    assert out_f32.shape == (N, Cout, H, W)
    assert jnp.allclose(out_f32, ref, rtol=1e-4, atol=1e-4), \
        "f32 path mismatch vs reference"

    # 2) Default bf16 matmul path (performance mode; f32 accum + f32 epilogue):
    #    tolerance set for bf16 input/weight rounding.
    out = conv_bn_leakyrelu(x, w, conv_b, gamma, beta, run_mean, run_var)
    out = jax.block_until_ready(out)
    assert out.shape == (N, Cout, H, W)
    assert jnp.allclose(out, ref, rtol=2e-2, atol=2e-2), \
        "bf16 path mismatch vs reference"

    print("KERNEL_OK")
</pallas_src>

<mosaic_0001>
module attributes {stable_mosaic.version = 11 : i64} {
  func.func @_conv_bn_lrelu_kernel(%arg0: i32, %arg1: i32, %arg2: i32, %arg3: memref<1x36x256xf32, #tpu.memory_space<vmem>>, %arg4: memref<8x36xf32, #tpu.memory_space<vmem>>, %arg5: memref<8x1xf32, #tpu.memory_space<vmem>>, %arg6: memref<1x8x256xf32, #tpu.memory_space<vmem>>) attributes {dimension_semantics = [#tpu.dimension_semantics<parallel>, #tpu.dimension_semantics<parallel>, #tpu.dimension_semantics<parallel>], iteration_bounds = array<i64: 2, 1, 1>, scalar_prefetch = 0 : i64, scratch_operands = 0 : i64, tpu.core_type = #tpu.core_type<tc>, window_params = [{transform_indices = @transform_0, window_bounds = array<i64: 1, 36, 256>}, {pipeline_mode = #tpu.pipeline_mode<synchronous>, transform_indices = @transform_1, window_bounds = array<i64: 8, 36>}, {pipeline_mode = #tpu.pipeline_mode<synchronous>, transform_indices = @transform_2, window_bounds = array<i64: 8, 1>}, {transform_indices = @transform_3, window_bounds = array<i64: 1, 8, 256>}]} {
    %c0 = arith.constant 0 : index
    %c0_0 = arith.constant 0 : index
    %0 = vector.load %arg4[%c0, %c0_0] : memref<8x36xf32, #tpu.memory_space<vmem>>, vector<8x36xf32>
    %c0_1 = arith.constant 0 : index
    %c0_2 = arith.constant 0 : index
    %c0_3 = arith.constant 0 : index
    %1 = vector.load %arg3[%c0_1, %c0_2, %c0_3] : memref<1x36x256xf32, #tpu.memory_space<vmem>>, vector<1x36x256xf32>
    %2 = vector.shape_cast %1 : vector<1x36x256xf32> to vector<36x256xf32>
    %cst = arith.constant dense<0.000000e+00> : vector<8x256xf32>
    %3 = tpu.matmul %0, %2, %cst {dimension_numbers = #tpu.dot_dimension_numbers<[1], [0], [0], [1], [0, 0, 1, 1], [], []>, precision = #tpu.contract_precision<fp32>} : vector<8x36xf32>, vector<36x256xf32>, vector<8x256xf32> -> vector<8x256xf32>
    %c0_4 = arith.constant 0 : index
    %c0_5 = arith.constant 0 : index
    %4 = vector.load %arg5[%c0_4, %c0_5] : memref<8x1xf32, #tpu.memory_space<vmem>>, vector<8x1xf32>
    %5 = vector.broadcast %4 : vector<8x1xf32> to vector<8x256xf32>
    %6 = arith.addf %3, %5 : vector<8x256xf32>
    %cst_6 = arith.constant 1.000000e-01 : f32
    %7 = vector.broadcast %cst_6 : f32 to vector<8x256xf32>
    %8 = arith.mulf %7, %6 : vector<8x256xf32>
    %9 = arith.maximumf %6, %8 : vector<8x256xf32>
    %c0_7 = arith.constant 0 : index
    %c0_8 = arith.constant 0 : index
    %c0_9 = arith.constant 0 : index
    %10 = vector.load %arg6[%c0_7, %c0_8, %c0_9] : memref<1x8x256xf32, #tpu.memory_space<vmem>>, vector<1x8x256xf32>
    %11 = vector.shape_cast %10 : vector<1x8x256xf32> to vector<8x256xf32>
    %12 = vector.shape_cast %9 : vector<8x256xf32> to vector<1x8x256xf32>
    tpu.vector_store %arg6[%c0_7, %c0_8, %c0_9], %12 {strides = array<i32>} : memref<1x8x256xf32, #tpu.memory_space<vmem>>, vector<1x8x256xf32>,
    return
  }
  func.func @transform_0(%arg0: i32, %arg1: i32, %arg2: i32) -> (i32, i32, i32) {
    %c0_i32 = arith.constant 0 : i32
    %c0_i32_0 = arith.constant 0 : i32
    return %arg0, %c0_i32, %arg2 : i32, i32, i32
  }
  func.func @transform_1(%arg0: i32, %arg1: i32, %arg2: i32) -> (i32, i32) {
    %c0_i32 = arith.constant 0 : i32
    %c0_i32_0 = arith.constant 0 : i32
    return %arg1, %c0_i32 : i32, i32
  }
  func.func @transform_2(%arg0: i32, %arg1: i32, %arg2: i32) -> (i32, i32) {
    %c0_i32 = arith.constant 0 : i32
    %c0_i32_0 = arith.constant 0 : i32
    return %arg1, %c0_i32 : i32, i32
  }
  func.func @transform_3(%arg0: i32, %arg1: i32, %arg2: i32) -> (i32, i32, i32) {
    %c0_i32 = arith.constant 0 : i32
    return %arg0, %arg1, %arg2 : i32, i32, i32
  }
}

</mosaic_0001>

<llo_original>
// kernel: conv_bn_leakyrelu.1
$region0: #{conv_bn_leakyrelu.1}
  #allocation0 [shape = 'u32[]', space=smem, size = 0x4, offset = 0x4, fixed_abs, tag = 'smem constant byte address 0x4 - core index']
  #allocation1 [shape = 'u32[144,128]{1,0:T(1,128)}', space=vmem, size = 0x12000, scoped, tag = 'internal scratch']
  %s0 = inlined_call_operand.vmem [shape: f32[2,36,256], index: 0, kind: input, shape index: {}]
  %s1 = inlined_call_operand.vmem [shape: f32[8,36], index: 1, kind: input, shape index: {}]
  %s2 = inlined_call_operand.vmem [shape: f32[8,1], index: 2, kind: input, shape index: {}]
  %s3 = inlined_call_operand.vmem [shape: f32[2,8,256], index: 3, kind: output, shape index: {}]
  %s4 = sld [smem:[#allocation0]]
  $region45: #{conv_bn_leakyrelu.1} parent=0
    _
  %s6 = ssub.s32 1, %s4
  %s7 = scalar_select 0, %s6, %s4
  loop: start=0, step=1, limit=4
  $region2: #{conv_bn_leakyrelu.1} parent=0 // loop_pre_header
    _
  $region3: #{conv_bn_leakyrelu.1} parent=0 // loop_header
    %s9 = sphi 0, %s13
    %p10 = scmp.ge.s32.totalorder %s9, 4
    %s16 = sphi 0, %s35
    %s17 = sphi 0, %s31
    %s18 = sphi 0, %s27
    %s19 = sphi 0, %s16
    %s20 = sphi 0, %s17
    %s21 = sphi 0, %s18
    %s22 = sphi 0, %s19
    %s23 = sphi 0, %s20
    %s24 = sphi 0, %s21
    %s40 = sphi 0, %s42
    %s43 = sphi 0, %s40
    %s44 = sphi 0, %s43
    %s60 = sphi 0, %s44
    %s66 = sphi 0, %s68
    %s69 = sphi 0, %s66
    %s70 = sphi 0, %s69
    %s86 = sphi 0, %s70
    %s92 = sphi 0, %s94
    %s95 = sphi 0, %s92
    %s96 = sphi 0, %s95
    %s112 = sphi 0, %s96
    %s122 = sphi 0, %s124
    %s125 = sphi 0, %s122
    %s126 = sphi 0, %s125
    %s142 = sphi 0, %s126
  $region4: #{conv_bn_leakyrelu.1} parent=0 // loop_header_branch
    %12 = sbr.rel (%p10) target = $region8
  $region5: #{conv_bn_leakyrelu.1} parent=0 // loop_body
    %s14 = ssub.s32 %s9, 1
    %s15 = ssub.s32 %s9, 2
    %s25 = sadd.s32 1, %s18
    %p26 = scmp.ge.s32.totalorder %s25, 1
    %s27 = scalar_select %p26, 0, %s25
    %s28 = sadd.s32 1, %s17
    %s29 = scalar_select %p26, %s28, %s17
    %p30 = scmp.ge.s32.totalorder %s29, 1
    %s31 = scalar_select %p30, 0, %s29
    %s32 = sadd.s32 1, %s16
    %s33 = scalar_select %p30, %s32, %s16
    %p34 = scmp.ge.s32.totalorder %s33, 2
    %s35 = scalar_select %p34, 0, %s33
    %s36 = ssub.s32 %s16, %s35
    %s37 = ssub.s32 %s18, %s27
    %s38 = sor.u32 %s36, %s37
    %p39 = scmp.eq.s32.totalorder %s38, 0
    %s41 = sadd.s32 %s40, 1
    %s42 = scalar_select %p39, %s40, %s41
    %p45 = pneg %p39
    %p46 = scmp.eq.s32.totalorder %s9, 1
    %p47 = por %p45, %p46
    %p48 = scmp.ne.s32.totalorder %s40, %s43
    %p49 = scmp.eq.s32.totalorder %s9, 0
    %p50 = por %p48, %p49
    %p51 = scmp.ne.s32.totalorder %s40, %s43
    %p52 = scmp.eq.s32.totalorder %s14, 1
    %p53 = por %p51, %p52
    %p54 = scmp.ne.s32.totalorder %s43, %s44
    %p55 = scmp.eq.s32.totalorder %s14, 0
    %p56 = por %p54, %p55
    %p57 = scmp.ne.s32.totalorder %s43, %s44
    %p58 = scmp.eq.s32.totalorder %s15, 1
    %p59 = por %p57, %p58
    %p61 = scmp.ne.s32.totalorder %s44, %s60
    %p62 = scmp.eq.s32.totalorder %s15, 0
    %p63 = por %p61, %p62
    %s64 = ssub.s32 %s17, %s31
    %p65 = scmp.eq.s32.totalorder %s64, 0
    %s67 = sadd.s32 %s66, 1
    %s68 = scalar_select %p65, %s66, %s67
    %p71 = pneg %p65
    %p72 = scmp.eq.s32.totalorder %s9, 1
    %p73 = por %p71, %p72
    %p74 = scmp.ne.s32.totalorder %s66, %s69
    %p75 = scmp.eq.s32.totalorder %s9, 0
    %p76 = por %p74, %p75
    %p77 = scmp.ne.s32.totalorder %s66, %s69
    %p78 = scmp.eq.s32.totalorder %s14, 1
    %p79 = por %p77, %p78
    %p80 = scmp.ne.s32.totalorder %s69, %s70
    %p81 = scmp.eq.s32.totalorder %s14, 0
    %p82 = por %p80, %p81
    %p83 = scmp.ne.s32.totalorder %s69, %s70
    %p84 = scmp.eq.s32.totalorder %s15, 1
    %p85 = por %p83, %p84
    %p87 = scmp.ne.s32.totalorder %s70, %s86
    %p88 = scmp.eq.s32.totalorder %s15, 0
    %p89 = por %p87, %p88
    %s90 = ssub.s32 %s17, %s31
    %p91 = scmp.eq.s32.totalorder %s90, 0
    %s93 = sadd.s32 %s92, 1
    %s94 = scalar_select %p91, %s92, %s93
    %p97 = pneg %p91
    %p98 = scmp.eq.s32.totalorder %s9, 1
    %p99 = por %p97, %p98
    %p100 = scmp.ne.s32.totalorder %s92, %s95
    %p101 = scmp.eq.s32.totalorder %s9, 0
    %p102 = por %p100, %p101
    %p103 = scmp.ne.s32.totalorder %s92, %s95
    %p104 = scmp.eq.s32.totalorder %s14, 1
    %p105 = por %p103, %p104
    %p106 = scmp.ne.s32.totalorder %s95, %s96
    %p107 = scmp.eq.s32.totalorder %s14, 0
    %p108 = por %p106, %p107
    %p109 = scmp.ne.s32.totalorder %s95, %s96
    %p110 = scmp.eq.s32.totalorder %s15, 1
    %p111 = por %p109, %p110
    %p113 = scmp.ne.s32.totalorder %s96, %s112
    %p114 = scmp.eq.s32.totalorder %s15, 0
    %p115 = por %p113, %p114
    %s116 = ssub.s32 %s16, %s35
    %s117 = ssub.s32 %s17, %s31
    %s118 = sor.u32 %s116, %s117
    %s119 = ssub.s32 %s18, %s27
    %s120 = sor.u32 %s118, %s119
    %p121 = scmp.eq.s32.totalorder %s120, 0
    %s123 = sadd.s32 %s122, 1
    %s124 = scalar_select %p121, %s122, %s123
    %p127 = pneg %p121
    %p128 = scmp.eq.s32.totalorder %s9, 1
    %p129 = por %p127, %p128
    %p130 = scmp.ne.s32.totalorder %s122, %s125
    %p131 = scmp.eq.s32.totalorder %s9, 0
    %p132 = por %p130, %p131
    %p133 = scmp.ne.s32.totalorder %s122, %s125
    %p134 = scmp.eq.s32.totalorder %s14, 1
    %p135 = por %p133, %p134
    %p136 = scmp.ne.s32.totalorder %s125, %s126
    %p137 = scmp.eq.s32.totalorder %s14, 0
    %p138 = por %p136, %p137
    %p139 = scmp.ne.s32.totalorder %s125, %s126
    %p140 = scmp.eq.s32.totalorder %s15, 1
    %p141 = por %p139, %p140
    %p143 = scmp.ne.s32.totalorder %s126, %s142
    %p144 = scmp.eq.s32.totalorder %s15, 0
    %p145 = por %p143, %p144
    %p146 = scmp.le.s32.totalorder 1, %s9
    %p147 = scmp.lt.s32.totalorder %s9, 3
    %p148 = pnand %p146, %p147
    %p149 = pneg %p148
    // Predicated region
    $region9: #{conv_bn_leakyrelu.1} parent=5 // pred_check
      _
    $region10: #{conv_bn_leakyrelu.1} parent=5 // pred_check_branch
      %151 = sbr.rel (%p148) target = $region12
    $region11: #{conv_bn_leakyrelu.1} parent=5 // pred_region
      %s152 = ssub.s32 %s9, 1
      // Predicated region
      $region13: #{conv_bn_leakyrelu.1} parent=11 // pred_check
        %p153 = pneg %p82
      $region14: #{conv_bn_leakyrelu.1} parent=11 // pred_check_branch
        %155 = sbr.rel (%p153) target = $region16
      $region15: #{conv_bn_leakyrelu.1} parent=11 // pred_region
        %p156 = scmp.lt.s32.totalorder %s20, 0
        %s157 = scalar_select %p156, %s20, 0
        %s158 = smul.addr %s157, 8
        %s159 = scalar_lea.vmem %s1, %s158
      $region16: #{conv_bn_leakyrelu.1} parent=11 // pred_fallthru
        _
      // Predicated region
      $region17: #{conv_bn_leakyrelu.1} parent=11 // pred_check
        %p160 = pneg %p108
      $region18: #{conv_bn_leakyrelu.1} parent=11 // pred_check_branch
        %162 = sbr.rel (%p160) target = $region20
      $region19: #{conv_bn_leakyrelu.1} parent=11 // pred_region
        %p163 = scmp.lt.s32.totalorder %s20, 0
        %s164 = scalar_select %p163, %s20, 0
        %s165 = smul.addr %s164, 8
        %s166 = scalar_lea.vmem %s2, %s165
      $region20: #{conv_bn_leakyrelu.1} parent=11 // pred_fallthru
        _
    $region12: #{conv_bn_leakyrelu.1} parent=5 // pred_fallthru
      _
    %p167 = scmp.lt.s32.totalorder %s9, 2
    // Predicated region
    $region21: #{conv_bn_leakyrelu.1} parent=5 // pred_check
      %p168 = pneg %p167
    $region22: #{conv_bn_leakyrelu.1} parent=5 // pred_check_branch
      %170 = sbr.rel (%p168) target = $region24
    $region23: #{conv_bn_leakyrelu.1} parent=5 // pred_region
      // Predicated region
      $region25: #{conv_bn_leakyrelu.1} parent=23 // pred_check
        %p171 = pneg %p50
      $region26: #{conv_bn_leakyrelu.1} parent=23 // pred_check_branch
        %173 = sbr.rel (%p171) target = $region28
      $region27: #{conv_bn_leakyrelu.1} parent=23 // pred_region
        %s174 = smul.u32 2, %s18
        %p175 = scmp.lt.s32.totalorder %s16, 1
        %s176 = scalar_select %p175, %s16, 1
        %p177 = scmp.lt.s32.totalorder %s174, 1
        %s178 = scalar_select %p177, %s174, 1
        %s179 = smul.addr %s176, 10
        %s180 = sadd.s32 %s178, %s179
        %s181 = smul.addr %s180, 8
        %s182 = scalar_lea.vmem %s0, %s181
        %s183 = smul.u32 2, %s18
      $region28: #{conv_bn_leakyrelu.1} parent=23 // pred_fallthru
        _
    $region24: #{conv_bn_leakyrelu.1} parent=5 // pred_fallthru
      _
    %p184 = scmp.le.s32.totalorder 1, %s9
    %p185 = scmp.lt.s32.totalorder %s9, 3
    %p186 = pnand %p184, %p185
    %p187 = pneg %p186
    // Predicated region
    $region29: #{conv_bn_leakyrelu.1} parent=5 // pred_check
      _
    $region30: #{conv_bn_leakyrelu.1} parent=5 // pred_check_branch
      %189 = sbr.rel (%p186) target = $region32
    $region31: #{conv_bn_leakyrelu.1} parent=5 // pred_region
      %s190 = ssub.s32 %s9, 1
      %s191 = smul.u32 2, %s21
      %p192 = scmp.lt.s32.totalorder %s19, 1
      %s193 = scalar_select %p192, %s19, 1
      %p194 = scmp.lt.s32.totalorder %s191, 1
      %s195 = scalar_select %p194, %s191, 1
      %s196 = smul.addr %s193, 10
      %s197 = sadd.s32 %s195, %s196
      %s198 = smul.addr %s197, 8
      %s199 = scalar_lea.vmem %s0, %s198
      %p200 = pneg %p56
      %p201 = pneg %p53
      %p202 = scmp.lt.s32.totalorder %s20, 0
      %s203 = scalar_select %p202, %s20, 0
      %s204 = smul.addr %s203, 8
      %s205 = scalar_lea.vmem %s1, %s204
      %p206 = pneg %p82
      %p207 = pneg %p79
      %p208 = scmp.lt.s32.totalorder %s20, 0
      %s209 = scalar_select %p208, %s20, 0
      %s210 = smul.addr %s209, 8
      %s211 = scalar_lea.vmem %s2, %s210
      %p212 = pneg %p108
      %p213 = pneg %p105
      %p214 = pneg %p138
      %p215 = pneg %p135
      %s216 = smul.u32 2, %s21
      %p217 = scmp.lt.s32.totalorder %s19, 1
      %s218 = scalar_select %p217, %s19, 1
      %p219 = scmp.lt.s32.totalorder %s20, 0
      %s220 = scalar_select %p219, %s20, 0
      %p221 = scmp.lt.s32.totalorder %s216, 1
      %s222 = scalar_select %p221, %s216, 1
      %s223 = smul.addr %s220, 2
      %s224 = sadd.s32 %s222, %s223
      %s225 = smul.addr %s218, 2
      %s226 = sadd.s32 %s224, %s225
      %s227 = smul.addr %s226, 8
      %s228 = scalar_lea.vmem %s3, %s227
      %s229 = smul.u32 2, %s21
      %p230 = scmp.lt.s32.totalorder %s19, 1
      %s231 = scalar_select %p230, %s19, 1
      %p232 = scmp.lt.s32.totalorder %s229, 1
      %s233 = scalar_select %p232, %s229, 1
      %s234 = smul.addr %s231, 10
      %s235 = sadd.s32 %s233, %s234
      %s236 = smul.addr %s235, 8
      %s237 = scalar_lea.vmem %s0, %s236
      %s238 = smul.u32 2, %s21
      %p239 = scmp.lt.s32.totalorder %s20, 0
      %s240 = scalar_select %p239, %s20, 0
      %s241 = smul.addr %s240, 8
      %s242 = scalar_lea.vmem %s1, %s241
      %p243 = scmp.lt.s32.totalorder %s20, 0
      %s244 = scalar_select %p243, %s20, 0
      %s245 = smul.addr %s244, 8
      %s246 = scalar_lea.vmem %s2, %s245
      %s247 = smul.u32 2, %s21
      %p248 = scmp.lt.s32.totalorder %s19, 1
      %s249 = scalar_select %p248, %s19, 1
      %p250 = scmp.lt.s32.totalorder %s20, 0
      %s251 = scalar_select %p250, %s20, 0
      %p252 = scmp.lt.s32.totalorder %s247, 1
      %s253 = scalar_select %p252, %s247, 1
      %s254 = smul.addr %s251, 2
      %s255 = sadd.s32 %s253, %s254
      %s256 = smul.addr %s249, 2
      %s257 = sadd.s32 %s255, %s256
      %s258 = smul.addr %s257, 8
      %s259 = scalar_lea.vmem %s3, %s258
      %s260 = smul.u32 2, %s21
      %v261 = vld [vmem:[%s242] sm:$0xff]
      %v262 = vld [vmem:[%s237] sm:$0xff]
      %v263 = vld [vmem:[%s237 + $0x8] sm:$0xff]
      %v264 = vld [vmem:[%s237 + $0x10] sm:$0xff]
      %v265 = vld [vmem:[%s237 + $0x18] sm:$0xff]
      %v266 = vld [vmem:[%s237 + $0x20] sm:$0xff]
      %v267 = vld [vmem:[%s237 + $0x28] sm:$0xff]
      %v268 = vld [vmem:[%s237 + $0x30] sm:$0xff]
      %v269 = vld [vmem:[%s237 + $0x38] sm:$0xff]
      %v270 = vld [vmem:[%s237 + $0x40] sm:$0xf]
      %v271 = vld [vmem:[%s237 + $0x48] sm:$0xf]
      %v272 = vld [vmem:[%s246] sm:$0xff]
      %274 = vset.pattern.permute.xlu0 0
      %275 = vperm.xlu0 %274, %v272
      %v276 = vpop.permute.xlu0 %275
      %vm278 = vcmask 293888
      %v280 = vsel %vm278, %v261, 0
      %vm282 = vcmask 1043456
      %v284 = vsel %vm282, %v270, 0
      %v287 = vsel %vm282, %v271, 0
      %v289 = vand.u32 %v263, 4294901760
      %290 = vmatprep.subr.mxu0 %v289
      %v291 = vand.u32 %v262, 4294901760
      %292 = vmatpush1.msra.mxu0 %v291
      %v293 = vand.u32 %v265, 4294901760
      %294 = vmatprep.subr.mxu0 %v293
      %v295 = vand.u32 %v264, 4294901760
      %296 = vmatpush1.msra.mxu0 %v295
      %v297 = vand.u32 %v267, 4294901760
      %298 = vmatprep.subr.mxu0 %v297
      %v299 = vand.u32 %v266, 4294901760
      %300 = vmatpush1.msra.mxu0 %v299
      %v301 = vand.u32 %v269, 4294901760
      %302 = vmatprep.subr.mxu0 %v301
      %v303 = vand.u32 %v268, 4294901760
      %304 = vmatpush1.msra.mxu0 %v303
      %v305 = vand.u32 %v287, 4294901760
      %306 = vmatprep.subr.mxu0 %v305
      %v307 = vand.u32 %v284, 4294901760
      %308 = vmatpush1.msra.mxu0 %v307
      %309 = vmatprep.subr.mxu0 0.0
      %310 = vmatpush1.msra.mxu0 0.0
      %311 = vmatprep.subr.mxu0 0.0
      %312 = vmatpush1.msra.mxu0 0.0
      %313 = vmatprep.subr.mxu0 0.0
      %314 = vmatpush1.msra.mxu0 0.0
      %315 = vmatprep.subr.mxu0 0.0
      %316 = vmatpush1.msra.mxu0 0.0
      %317 = vmatprep.subr.mxu0 0.0
      %318 = vmatpush1.msra.mxu0 0.0
      %319 = vmatprep.subr.mxu0 0.0
      %320 = vmatpush1.msra.mxu0 0.0
      %321 = vmatprep.subr.mxu0 0.0
      %322 = vmatpush1.msra.mxu0 0.0
      %323 = vmatprep.subr.mxu0 0.0
      %324 = vmatpush1.msra.mxu0 0.0
      %325 = vmatprep.subr.mxu0 0.0
      %326 = vmatpush1.msra.mxu0 0.0
      %327 = vmatprep.subr.mxu0 0.0
      %328 = vmatpush1.msra.mxu0 0.0
      %329 = vmatprep.subr.mxu0 0.0
      %330 = vmatpush1.msra.mxu0 0.0
      %331 = vmatprep.subr.mxu0 0.0
      %332 = vmatpush1.msra.mxu0 0.0
      %333 = vmatprep.subr.mxu0 0.0
      %334 = vmatpush1.msra.mxu0 0.0
      %335 = vmatprep.subr.mxu0 0.0
      %336 = vmatpush1.msra.mxu0 0.0
      %337 = vmatprep.subr.mxu0 0.0
      %338 = vmatpush1.msra.mxu0 0.0
      %339 = vmatprep.subr.mxu0 0.0
      %340 = vmatpush1.msra.mxu0 0.0
      %341 = vmatprep.subr.mxu0 0.0
      %342 = vmatpush1.msra.mxu0 0.0
      %343 = vmatprep.subr.mxu0 0.0
      %344 = vmatpush1.msra.mxu0 0.0
      %345 = vmatprep.subr.mxu0 0.0
      %346 = vmatpush1.msra.mxu0 0.0
      %347 = vmatprep.subr.mxu0 0.0
      %348 = vmatpush1.msra.mxu0 0.0
      %349 = vmatprep.subr.mxu0 0.0
      %350 = vmatpush1.msra.mxu0 0.0
      %351 = vmatprep.subr.mxu0 0.0
      %352 = vmatpush1.msra.mxu0 0.0
      %353 = vmatprep.subr.mxu0 0.0
      %354 = vmatpush1.msra.mxu0 0.0
      %355 = vmatprep.subr.mxu0 0.0
      %356 = vmatpush1.msra.mxu0 0.0
      %357 = vmatprep.subr.mxu0 0.0
      %358 = vmatpush1.msra.mxu0 0.0
      %359 = vmatprep.subr.mxu0 0.0
      %360 = vmatpush1.msra.mxu0 0.0
      %361 = vmatprep.subr.mxu0 0.0
      %362 = vmatpush1.msra.mxu0 0.0
      %363 = vmatprep.mubr.f32.mxu0 0.0
      %v364 = vand.u32 %v280, 4294901760
      %v365 = vsub.f32 %v280, %v364
      %v366 = vand.u32 %v365, 4294901760
      %v367 = vsub.f32 %v365, %v366
      %v368 = vand.u32 %v367, 4294901760
      %369 = vmatmul.mubr.f32.gmra.mrb[0].mxu0 %v368
      %v370 = vpop.f32.mrb[0].mxu0
      %v371 = vadd.f32 %v276, %v370
      %v372 = vpop.f32.mrb[0].mxu0
      %v373 = vadd.f32 %v276, %v372
      %374 = vdwg.mxu0
      %v375 = vand.u32 %v263, 4294901760
      %v376 = vsub.f32 %v263, %v375
      %v377 = vand.u32 %v376, 4294901760
      %v378 = vsub.f32 %v376, %v377
      %v379 = vand.u32 %v378, 4294901760
      %380 = vmatprep.subr.mxu0 %v379
      %v381 = vand.u32 %v262, 4294901760
      %v382 = vsub.f32 %v262, %v381
      %v383 = vand.u32 %v382, 4294901760
      %v384 = vsub.f32 %v382, %v383
      %v385 = vand.u32 %v384, 4294901760
      %386 = vmatpush1.msra.mxu0 %v385
      %v387 = vand.u32 %v265, 4294901760
      %v388 = vsub.f32 %v265, %v387
      %v389 = vand.u32 %v388, 4294901760
      %v390 = vsub.f32 %v388, %v389
      %v391 = vand.u32 %v390, 4294901760
      %392 = vmatprep.subr.mxu0 %v391
      %v393 = vand.u32 %v264, 4294901760
      %v394 = vsub.f32 %v264, %v393
      %v395 = vand.u32 %v394, 4294901760
      %v396 = vsub.f32 %v394, %v395
      %v397 = vand.u32 %v396, 4294901760
      %398 = vmatpush1.msra.mxu0 %v397
      %v399 = vand.u32 %v267, 4294901760
      %v400 = vsub.f32 %v267, %v399
      %v401 = vand.u32 %v400, 4294901760
      %v402 = vsub.f32 %v400, %v401
      %v403 = vand.u32 %v402, 4294901760
      %404 = vmatprep.subr.mxu0 %v403
      %v405 = vand.u32 %v266, 4294901760
      %v406 = vsub.f32 %v266, %v405
      %v407 = vand.u32 %v406, 4294901760
      %v408 = vsub.f32 %v406, %v407
      %v409 = vand.u32 %v408, 4294901760
      %410 = vmatpush1.msra.mxu0 %v409
      %v411 = vand.u32 %v269, 4294901760
      %v412 = vsub.f32 %v269, %v411
      %v413 = vand.u32 %v412, 4294901760
      %v414 = vsub.f32 %v412, %v413
      %v415 = vand.u32 %v414, 4294901760
      %416 = vmatprep.subr.mxu0 %v415
      %v417 = vand.u32 %v268, 4294901760
      %v418 = vsub.f32 %v268, %v417
      %v419 = vand.u32 %v418, 4294901760
      %v420 = vsub.f32 %v418, %v419
      %v421 = vand.u32 %v420, 4294901760
      %422 = vmatpush1.msra.mxu0 %v421
      %v423 = vand.u32 %v287, 4294901760
      %v424 = vsub.f32 %v287, %v423
      %v425 = vand.u32 %v424, 4294901760
      %v426 = vsub.f32 %v424, %v425
      %v427 = vand.u32 %v426, 4294901760
      %428 = vmatprep.subr.mxu0 %v427
      %v429 = vand.u32 %v284, 4294901760
      %v430 = vsub.f32 %v284, %v429
      %v431 = vand.u32 %v430, 4294901760
      %v432 = vsub.f32 %v430, %v431
      %v433 = vand.u32 %v432, 4294901760
      %434 = vmatpush1.msra.mxu0 %v433
      %435 = vmatprep.subr.mxu0 0.0
      %436 = vmatpush1.msra.mxu0 0.0
      %437 = vmatprep.subr.mxu0 0.0
      %438 = vmatpush1.msra.mxu0 0.0
      %439 = vmatprep.subr.mxu0 0.0
      %440 = vmatpush1.msra.mxu0 0.0
      %441 = vmatprep.subr.mxu0 0.0
      %442 = vmatpush1.msra.mxu0 0.0
      %443 = vmatprep.subr.mxu0 0.0
      %444 = vmatpush1.msra.mxu0 0.0
      %445 = vmatprep.subr.mxu0 0.0
      %446 = vmatpush1.msra.mxu0 0.0
      %447 = vmatprep.subr.mxu0 0.0
      %448 = vmatpush1.msra.mxu0 0.0
      %449 = vmatprep.subr.mxu0 0.0
      %450 = vmatpush1.msra.mxu0 0.0
      %451 = vmatprep.subr.mxu0 0.0
      %452 = vmatpush1.msra.mxu0 0.0
      %453 = vmatprep.subr.mxu0 0.0
      %454 = vmatpush1.msra.mxu0 0.0
      %455 = vmatprep.subr.mxu0 0.0
      %456 = vmatpush1.msra.mxu0 0.0
      %457 = vmatprep.subr.mxu0 0.0
      %458 = vmatpush1.msra.mxu0 0.0
      %459 = vmatprep.subr.mxu0 0.0
      %460 = vmatpush1.msra.mxu0 0.0
      %461 = vmatprep.subr.mxu0 0.0
      %462 = vmatpush1.msra.mxu0 0.0
      %463 = vmatprep.subr.mxu0 0.0
      %464 = vmatpush1.msra.mxu0 0.0
      %465 = vmatprep.subr.mxu0 0.0
      %466 = vmatpush1.msra.mxu0 0.0
      %467 = vmatprep.subr.mxu0 0.0
      %468 = vmatpush1.msra.mxu0 0.0
      %469 = vmatprep.subr.mxu0 0.0
      %470 = vmatpush1.msra.mxu0 0.0
      %471 = vmatprep.subr.mxu0 0.0
      %472 = vmatpush1.msra.mxu0 0.0
      %473 = vmatprep.subr.mxu0 0.0
      %474 = vmatpush1.msra.mxu0 0.0
      %475 = vmatprep.subr.mxu0 0.0
      %476 = vmatpush1.msra.mxu0 0.0
      %477 = vmatprep.subr.mxu0 0.0
      %478 = vmatpush1.msra.mxu0 0.0
      %479 = vmatprep.subr.mxu0 0.0
      %480 = vmatpush1.msra.mxu0 0.0
      %481 = vmatprep.subr.mxu0 0.0
      %482 = vmatpush1.msra.mxu0 0.0
      %483 = vmatprep.subr.mxu0 0.0
      %484 = vmatpush1.msra.mxu0 0.0
      %485 = vmatprep.subr.mxu0 0.0
      %486 = vmatpush1.msra.mxu0 0.0
      %487 = vmatprep.subr.mxu0 0.0
      %488 = vmatpush1.msra.mxu0 0.0
      %489 = vmatprep.mubr.f32.mxu0 0.0
      %v490 = vand.u32 %v280, 4294901760
      %491 = vmatmul.mubr.f32.gmra.mrb[0].mxu0 %v490
      %v492 = vpop.f32.mrb[0].mxu0
      %v493 = vadd.f32 %v371, %v492
      %v494 = vpop.f32.mrb[0].mxu0
      %v495 = vadd.f32 %v373, %v494
      %496 = vdwg.mxu0
      %v497 = vand.u32 %v263, 4294901760
      %v498 = vsub.f32 %v263, %v497
      %499 = vmatprep.subr.mxu0 %v498
      %v500 = vand.u32 %v262, 4294901760
      %v501 = vsub.f32 %v262, %v500
      %502 = vmatpush1.msra.mxu0 %v501
      %v503 = vand.u32 %v265, 4294901760
      %v504 = vsub.f32 %v265, %v503
      %505 = vmatprep.subr.mxu0 %v504
      %v506 = vand.u32 %v264, 4294901760
      %v507 = vsub.f32 %v264, %v506
      %508 = vmatpush1.msra.mxu0 %v507
      %v509 = vand.u32 %v267, 4294901760
      %v510 = vsub.f32 %v267, %v509
      %511 = vmatprep.subr.mxu0 %v510
      %v512 = vand.u32 %v266, 4294901760
      %v513 = vsub.f32 %v266, %v512
      %514 = vmatpush1.msra.mxu0 %v513
      %v515 = vand.u32 %v269, 4294901760
      %v516 = vsub.f32 %v269, %v515
      %517 = vmatprep.subr.mxu0 %v516
      %v518 = vand.u32 %v268, 4294901760
      %v519 = vsub.f32 %v268, %v518
      %520 = vmatpush1.msra.mxu0 %v519
      %v521 = vand.u32 %v287, 4294901760
      %v522 = vsub.f32 %v287, %v521
      %523 = vmatprep.subr.mxu0 %v522
      %v524 = vand.u32 %v284, 4294901760
      %v525 = vsub.f32 %v284, %v524
      %526 = vmatpush1.msra.mxu0 %v525
      %527 = vmatprep.subr.mxu0 0.0
      %528 = vmatpush1.msra.mxu0 0.0
      %529 = vmatprep.subr.mxu0 0.0
      %530 = vmatpush1.msra.mxu0 0.0
      %531 = vmatprep.subr.mxu0 0.0
      %532 = vmatpush1.msra.mxu0 0.0
      %533 = vmatprep.subr.mxu0 0.0
      %534 = vmatpush1.msra.mxu0 0.0
      %535 = vmatprep.subr.mxu0 0.0
      %536 = vmatpush1.msra.mxu0 0.0
      %537 = vmatprep.subr.mxu0 0.0
      %538 = vmatpush1.msra.mxu0 0.0
      %539 = vmatprep.subr.mxu0 0.0
      %540 = vmatpush1.msra.mxu0 0.0
      %541 = vmatprep.subr.mxu0 0.0
      %542 = vmatpush1.msra.mxu0 0.0
      %543 = vmatprep.subr.mxu0 0.0
      %544 = vmatpush1.msra.mxu0 0.0
      %545 = vmatprep.subr.mxu0 0.0
      %546 = vmatpush1.msra.mxu0 0.0
      %547 = vmatprep.subr.mxu0 0.0
      %548 = vmatpush1.msra.mxu0 0.0
      %549 = vmatprep.subr.mxu0 0.0
      %550 = vmatpush1.msra.mxu0 0.0
      %551 = vmatprep.subr.mxu0 0.0
      %552 = vmatpush1.msra.mxu0 0.0
      %553 = vmatprep.subr.mxu0 0.0
      %554 = vmatpush1.msra.mxu0 0.0
      %555 = vmatprep.subr.mxu0 0.0
      %556 = vmatpush1.msra.mxu0 0.0
      %557 = vmatprep.subr.mxu0 0.0
      %558 = vmatpush1.msra.mxu0 0.0
      %559 = vmatprep.subr.mxu0 0.0
      %560 = vmatpush1.msra.mxu0 0.0
      %561 = vmatprep.subr.mxu0 0.0
      %562 = vmatpush1.msra.mxu0 0.0
      %563 = vmatprep.subr.mxu0 0.0
      %564 = vmatpush1.msra.mxu0 0.0
      %565 = vmatprep.subr.mxu0 0.0
      %566 = vmatpush1.msra.mxu0 0.0
      %567 = vmatprep.subr.mxu0 0.0
      %568 = vmatpush1.msra.mxu0 0.0
      %569 = vmatprep.subr.mxu0 0.0
      %570 = vmatpush1.msra.mxu0 0.0
      %571 = vmatprep.subr.mxu0 0.0
      %572 = vmatpush1.msra.mxu0 0.0
      %573 = vmatprep.subr.mxu0 0.0
      %574 = vmatpush1.msra.mxu0 0.0
      %575 = vmatprep.subr.mxu0 0.0
      %576 = vmatpush1.msra.mxu0 0.0
      %577 = vmatprep.subr.mxu0 0.0
      %578 = vmatpush1.msra.mxu0 0.0
      %579 = vmatprep.subr.mxu0 0.0
      %580 = vmatpush1.msra.mxu0 0.0
      %581 = vmatprep.mubr.f32.mxu0 0.0
      %v582 = vand.u32 %v280, 4294901760
      %v583 = vsub.f32 %v280, %v582
      %584 = vmatmul.mubr.f32.gmra.mrb[0].mxu0 %v583
      %v585 = vpop.f32.mrb[0].mxu0
      %v586 = vadd.f32 %v493, %v585
      %v587 = vpop.f32.mrb[0].mxu0
      %v588 = vadd.f32 %v495, %v587
      %589 = vdwg.mxu0
      %v590 = vand.u32 %v263, 4294901760
      %591 = vmatprep.subr.mxu0 %v590
      %v592 = vand.u32 %v262, 4294901760
      %593 = vmatpush1.msra.mxu0 %v592
      %v594 = vand.u32 %v265, 4294901760
      %595 = vmatprep.subr.mxu0 %v594
      %v596 = vand.u32 %v264, 4294901760
      %597 = vmatpush1.msra.mxu0 %v596
      %v598 = vand.u32 %v267, 4294901760
      %599 = vmatprep.subr.mxu0 %v598
      %v600 = vand.u32 %v266, 4294901760
      %601 = vmatpush1.msra.mxu0 %v600
      %v602 = vand.u32 %v269, 4294901760
      %603 = vmatprep.subr.mxu0 %v602
      %v604 = vand.u32 %v268, 4294901760
      %605 = vmatpush1.msra.mxu0 %v604
      %v606 = vand.u32 %v287, 4294901760
      %607 = vmatprep.subr.mxu0 %v606
      %v608 = vand.u32 %v284, 4294901760
      %609 = vmatpush1.msra.mxu0 %v608
      %610 = vmatprep.subr.mxu0 0.0
      %611 = vmatpush1.msra.mxu0 0.0
      %612 = vmatprep.subr.mxu0 0.0
      %613 = vmatpush1.msra.mxu0 0.0
      %614 = vmatprep.subr.mxu0 0.0
      %615 = vmatpush1.msra.mxu0 0.0
      %616 = vmatprep.subr.mxu0 0.0
      %617 = vmatpush1.msra.mxu0 0.0
      %618 = vmatprep.subr.mxu0 0.0
      %619 = vmatpush1.msra.mxu0 0.0
      %620 = vmatprep.subr.mxu0 0.0
      %621 = vmatpush1.msra.mxu0 0.0
      %622 = vmatprep.subr.mxu0 0.0
      %623 = vmatpush1.msra.mxu0 0.0
      %624 = vmatprep.subr.mxu0 0.0
      %625 = vmatpush1.msra.mxu0 0.0
      %626 = vmatprep.subr.mxu0 0.0
      %627 = vmatpush1.msra.mxu0 0.0
      %628 = vmatprep.subr.mxu0 0.0
      %629 = vmatpush1.msra.mxu0 0.0
      %630 = vmatprep.subr.mxu0 0.0
      %631 = vmatpush1.msra.mxu0 0.0
      %632 = vmatprep.subr.mxu0 0.0
      %633 = vmatpush1.msra.mxu0 0.0
      %634 = vmatprep.subr.mxu0 0.0
      %635 = vmatpush1.msra.mxu0 0.0
      %636 = vmatprep.subr.mxu0 0.0
      %637 = vmatpush1.msra.mxu0 0.0
      %638 = vmatprep.subr.mxu0 0.0
      %639 = vmatpush1.msra.mxu0 0.0
      %640 = vmatprep.subr.mxu0 0.0
      %641 = vmatpush1.msra.mxu0 0.0
      %642 = vmatprep.subr.mxu0 0.0
      %643 = vmatpush1.msra.mxu0 0.0
      %644 = vmatprep.subr.mxu0 0.0
      %645 = vmatpush1.msra.mxu0 0.0
      %646 = vmatprep.subr.mxu0 0.0
      %647 = vmatpush1.msra.mxu0 0.0
      %648 = vmatprep.subr.mxu0 0.0
      %649 = vmatpush1.msra.mxu0 0.0
      %650 = vmatprep.subr.mxu0 0.0
      %651 = vmatpush1.msra.mxu0 0.0
      %652 = vmatprep.subr.mxu0 0.0
      %653 = vmatpush1.msra.mxu0 0.0
      %654 = vmatprep.subr.mxu0 0.0
      %655 = vmatpush1.msra.mxu0 0.0
      %656 = vmatprep.subr.mxu0 0.0
      %657 = vmatpush1.msra.mxu0 0.0
      %658 = vmatprep.subr.mxu0 0.0
      %659 = vmatpush1.msra.mxu0 0.0
      %660 = vmatprep.subr.mxu0 0.0
      %661 = vmatpush1.msra.mxu0 0.0
      %662 = vmatprep.subr.mxu0 0.0
      %663 = vmatpush1.msra.mxu0 0.0
      %664 = vmatprep.mubr.f32.mxu0 0.0
      %v665 = vand.u32 %v280, 4294901760
      %v666 = vsub.f32 %v280, %v665
      %v667 = vand.u32 %v666, 4294901760
      %668 = vmatmul.mubr.f32.gmra.mrb[0].mxu0 %v667
      %v669 = vpop.f32.mrb[0].mxu0
      %v670 = vadd.f32 %v586, %v669
      %v671 = vpop.f32.mrb[0].mxu0
      %v672 = vadd.f32 %v588, %v671
      %673 = vdwg.mxu0
      %v674 = vand.u32 %v263, 4294901760
      %v675 = vsub.f32 %v263, %v674
      %v676 = vand.u32 %v675, 4294901760
      %677 = vmatprep.subr.mxu0 %v676
      %v678 = vand.u32 %v262, 4294901760
      %v679 = vsub.f32 %v262, %v678
      %v680 = vand.u32 %v679, 4294901760
      %681 = vmatpush1.msra.mxu0 %v680
      %v682 = vand.u32 %v265, 4294901760
      %v683 = vsub.f32 %v265, %v682
      %v684 = vand.u32 %v683, 4294901760
      %685 = vmatprep.subr.mxu0 %v684
      %v686 = vand.u32 %v264, 4294901760
      %v687 = vsub.f32 %v264, %v686
      %v688 = vand.u32 %v687, 4294901760
      %689 = vmatpush1.msra.mxu0 %v688
      %v690 = vand.u32 %v267, 4294901760
      %v691 = vsub.f32 %v267, %v690
      %v692 = vand.u32 %v691, 4294901760
      %693 = vmatprep.subr.mxu0 %v692
      %v694 = vand.u32 %v266, 4294901760
      %v695 = vsub.f32 %v266, %v694
      %v696 = vand.u32 %v695, 4294901760
      %697 = vmatpush1.msra.mxu0 %v696
      %v698 = vand.u32 %v269, 4294901760
      %v699 = vsub.f32 %v269, %v698
      %v700 = vand.u32 %v699, 4294901760
      %701 = vmatprep.subr.mxu0 %v700
      %v702 = vand.u32 %v268, 4294901760
      %v703 = vsub.f32 %v268, %v702
      %v704 = vand.u32 %v703, 4294901760
      %705 = vmatpush1.msra.mxu0 %v704
      %v706 = vand.u32 %v287, 4294901760
      %v707 = vsub.f32 %v287, %v706
      %v708 = vand.u32 %v707, 4294901760
      %709 = vmatprep.subr.mxu0 %v708
      %v710 = vand.u32 %v284, 4294901760
      %v711 = vsub.f32 %v284, %v710
      %v712 = vand.u32 %v711, 4294901760
      %713 = vmatpush1.msra.mxu0 %v712
      %714 = vmatprep.subr.mxu0 0.0
      %715 = vmatpush1.msra.mxu0 0.0
      %716 = vmatprep.subr.mxu0 0.0
      %717 = vmatpush1.msra.mxu0 0.0
      %718 = vmatprep.subr.mxu0 0.0
      %719 = vmatpush1.msra.mxu0 0.0
      %720 = vmatprep.subr.mxu0 0.0
      %721 = vmatpush1.msra.mxu0 0.0
      %722 = vmatprep.subr.mxu0 0.0
      %723 = vmatpush1.msra.mxu0 0.0
      %724 = vmatprep.subr.mxu0 0.0
      %725 = vmatpush1.msra.mxu0 0.0
      %726 = vmatprep.subr.mxu0 0.0
      %727 = vmatpush1.msra.mxu0 0.0
      %728 = vmatprep.subr.mxu0 0.0
      %729 = vmatpush1.msra.mxu0 0.0
      %730 = vmatprep.subr.mxu0 0.0
      %731 = vmatpush1.msra.mxu0 0.0
      %732 = vmatprep.subr.mxu0 0.0
      %733 = vmatpush1.msra.mxu0 0.0
      %734 = vmatprep.subr.mxu0 0.0
      %735 = vmatpush1.msra.mxu0 0.0
      %736 = vmatprep.subr.mxu0 0.0
      %737 = vmatpush1.msra.mxu0 0.0
      %738 = vmatprep.subr.mxu0 0.0
      %739 = vmatpush1.msra.mxu0 0.0
      %740 = vmatprep.subr.mxu0 0.0
      %741 = vmatpush1.msra.mxu0 0.0
      %742 = vmatprep.subr.mxu0 0.0
      %743 = vmatpush1.msra.mxu0 0.0
      %744 = vmatprep.subr.mxu0 0.0
      %745 = vmatpush1.msra.mxu0 0.0
      %746 = vmatprep.subr.mxu0 0.0
      %747 = vmatpush1.msra.mxu0 0.0
      %748 = vmatprep.subr.mxu0 0.0
      %749 = vmatpush1.msra.mxu0 0.0
      %750 = vmatprep.subr.mxu0 0.0
      %751 = vmatpush1.msra.mxu0 0.0
      %752 = vmatprep.subr.mxu0 0.0
      %753 = vmatpush1.msra.mxu0 0.0
      %754 = vmatprep.subr.mxu0 0.0
      %755 = vmatpush1.msra.mxu0 0.0
      %756 = vmatprep.subr.mxu0 0.0
      %757 = vmatpush1.msra.mxu0 0.0
      %758 = vmatprep.subr.mxu0 0.0
      %759 = vmatpush1.msra.mxu0 0.0
      %760 = vmatprep.subr.mxu0 0.0
      %761 = vmatpush1.msra.mxu0 0.0
      %762 = vmatprep.subr.mxu0 0.0
      %763 = vmatpush1.msra.mxu0 0.0
      %764 = vmatprep.subr.mxu0 0.0
      %765 = vmatpush1.msra.mxu0 0.0
      %766 = vmatprep.subr.mxu0 0.0
      %767 = vmatpush1.msra.mxu0 0.0
      %768 = vmatprep.mubr.f32.mxu0 0.0
      %v769 = vand.u32 %v280, 4294901760
      %770 = vmatmul.mubr.f32.gmra.mrb[0].mxu0 %v769
      %v771 = vpop.f32.mrb[0].mxu0
      %v772 = vadd.f32 %v670, %v771
      %v773 = vpop.f32.mrb[0].mxu0
      %v774 = vadd.f32 %v672, %v773
      %775 = vdwg.mxu0
      %v776 = vand.u32 %v263, 4294901760
      %777 = vmatprep.subr.mxu0 %v776
      %v778 = vand.u32 %v262, 4294901760
      %779 = vmatpush1.msra.mxu0 %v778
      %v780 = vand.u32 %v265, 4294901760
      %781 = vmatprep.subr.mxu0 %v780
      %v782 = vand.u32 %v264, 4294901760
      %783 = vmatpush1.msra.mxu0 %v782
      %v784 = vand.u32 %v267, 4294901760
      %785 = vmatprep.subr.mxu0 %v784
      %v786 = vand.u32 %v266, 4294901760
      %787 = vmatpush1.msra.mxu0 %v786
      %v788 = vand.u32 %v269, 4294901760
      %789 = vmatprep.subr.mxu0 %v788
      %v790 = vand.u32 %v268, 4294901760
      %791 = vmatpush1.msra.mxu0 %v790
      %v792 = vand.u32 %v287, 4294901760
      %793 = vmatprep.subr.mxu0 %v792
      %v794 = vand.u32 %v284, 4294901760
      %795 = vmatpush1.msra.mxu0 %v794
      %796 = vmatprep.subr.mxu0 0.0
      %797 = vmatpush1.msra.mxu0 0.0
      %798 = vmatprep.subr.mxu0 0.0
      %799 = vmatpush1.msra.mxu0 0.0
      %800 = vmatprep.subr.mxu0 0.0
      %801 = vmatpush1.msra.mxu0 0.0
      %802 = vmatprep.subr.mxu0 0.0
      %803 = vmatpush1.msra.mxu0 0.0
      %804 = vmatprep.subr.mxu0 0.0
      %805 = vmatpush1.msra.mxu0 0.0
      %806 = vmatprep.subr.mxu0 0.0
      %807 = vmatpush1.msra.mxu0 0.0
      %808 = vmatprep.subr.mxu0 0.0
      %809 = vmatpush1.msra.mxu0 0.0
      %810 = vmatprep.subr.mxu0 0.0
      %811 = vmatpush1.msra.mxu0 0.0
      %812 = vmatprep.subr.mxu0 0.0
      %813 = vmatpush1.msra.mxu0 0.0
      %814 = vmatprep.subr.mxu0 0.0
      %815 = vmatpush1.msra.mxu0 0.0
      %816 = vmatprep.subr.mxu0 0.0
      %817 = vmatpush1.msra.mxu0 0.0
      %818 = vmatprep.subr.mxu0 0.0
      %819 = vmatpush1.msra.mxu0 0.0
      %820 = vmatprep.subr.mxu0 0.0
      %821 = vmatpush1.msra.mxu0 0.0
      %822 = vmatprep.subr.mxu0 0.0
      %823 = vmatpush1.msra.mxu0 0.0
      %824 = vmatprep.subr.mxu0 0.0
      %825 = vmatpush1.msra.mxu0 0.0
      %826 = vmatprep.subr.mxu0 0.0
      %827 = vmatpush1.msra.mxu0 0.0
      %828 = vmatprep.subr.mxu0 0.0
      %829 = vmatpush1.msra.mxu0 0.0
      %830 = vmatprep.subr.mxu0 0.0
      %831 = vmatpush1.msra.mxu0 0.0
      %832 = vmatprep.subr.mxu0 0.0
      %833 = vmatpush1.msra.mxu0 0.0
      %834 = vmatprep.subr.mxu0 0.0
      %835 = vmatpush1.msra.mxu0 0.0
      %836 = vmatprep.subr.mxu0 0.0
      %837 = vmatpush1.msra.mxu0 0.0
      %838 = vmatprep.subr.mxu0 0.0
      %839 = vmatpush1.msra.mxu0 0.0
      %840 = vmatprep.subr.mxu0 0.0
      %841 = vmatpush1.msra.mxu0 0.0
      %842 = vmatprep.subr.mxu0 0.0
      %843 = vmatpush1.msra.mxu0 0.0
      %844 = vmatprep.subr.mxu0 0.0
      %845 = vmatpush1.msra.mxu0 0.0
      %846 = vmatprep.subr.mxu0 0.0
      %847 = vmatpush1.msra.mxu0 0.0
      %848 = vmatprep.subr.mxu0 0.0
      %849 = vmatpush1.msra.mxu0 0.0
      %850 = vmatprep.mubr.f32.mxu0 0.0
      %v851 = vand.u32 %v280, 4294901760
      %852 = vmatmul.mubr.f32.gmra.mrb[0].mxu0 %v851
      %v853 = vpop.f32.mrb[0].mxu0
      %v854 = vadd.f32 %v772, %v853
      %v855 = vpop.f32.mrb[0].mxu0
      %v856 = vadd.f32 %v774, %v855
      %857 = vdwg.mxu0
      %v858 = vmul.f32 %v854, 0.1
      %v859 = vmul.f32 %v856, 0.1
      %v860 = vmax.f32 %v854, %v858
      %v861 = vmax.f32 %v856, %v859
      %862 = vst [vmem:[%s259] sm:$0xff] %v860
      %863 = vst [vmem:[%s259 + $0x8] sm:$0xff] %v861
      %s864 = smul.u32 2, %s21
      %p865 = scmp.lt.s32.totalorder %s19, 1
      %s866 = scalar_select %p865, %s19, 1
      %p867 = scmp.lt.s32.totalorder %s20, 0
      %s868 = scalar_select %p867, %s20, 0
      %p869 = scmp.lt.s32.totalorder %s864, 1
      %s870 = scalar_select %p869, %s864, 1
      %s871 = smul.addr %s868, 2
      %s872 = sadd.s32 %s870, %s871
      %s873 = smul.addr %s866, 2
      %s874 = sadd.s32 %s872, %s873
      %s875 = smul.addr %s874, 8
      %s876 = scalar_lea.vmem %s3, %s875
      // Predicated region
      $region33: #{conv_bn_leakyrelu.1} parent=31 // pred_check
        %p877 = pneg %p135
      $region34: #{conv_bn_leakyrelu.1} parent=31 // pred_check_branch
        %879 = sbr.rel (%p877) target = $region36
      $region35: #{conv_bn_leakyrelu.1} parent=31 // pred_region
        %s880 = smul.u32 2, %s21
      $region36: #{conv_bn_leakyrelu.1} parent=31 // pred_fallthru
        _
    $region32: #{conv_bn_leakyrelu.1} parent=5 // pred_fallthru
      _
    %p881 = scmp.le.s32.totalorder 2, %s9
    // Predicated region
    $region37: #{conv_bn_leakyrelu.1} parent=5 // pred_check
      %p882 = pneg %p881
    $region38: #{conv_bn_leakyrelu.1} parent=5 // pred_check_branch
      %884 = sbr.rel (%p882) target = $region40
    $region39: #{conv_bn_leakyrelu.1} parent=5 // pred_region
      %s885 = ssub.s32 %s9, 2
      // Predicated region
      $region41: #{conv_bn_leakyrelu.1} parent=39 // pred_check
        %p886 = pneg %p141
      $region42: #{conv_bn_leakyrelu.1} parent=39 // pred_check_branch
        %888 = sbr.rel (%p886) target = $region44
      $region43: #{conv_bn_leakyrelu.1} parent=39 // pred_region
        %s889 = smul.u32 2, %s24
        %p890 = scmp.lt.s32.totalorder %s22, 1
        %s891 = scalar_select %p890, %s22, 1
        %p892 = scmp.lt.s32.totalorder %s23, 0
        %s893 = scalar_select %p892, %s23, 0
        %p894 = scmp.lt.s32.totalorder %s889, 1
        %s895 = scalar_select %p894, %s889, 1
        %s896 = smul.addr %s893, 2
        %s897 = sadd.s32 %s895, %s896
        %s898 = smul.addr %s891, 2
        %s899 = sadd.s32 %s897, %s898
        %s900 = smul.addr %s899, 8
        %s901 = scalar_lea.vmem %s3, %s900
      $region44: #{conv_bn_leakyrelu.1} parent=39 // pred_fallthru
        _
    $region40: #{conv_bn_leakyrelu.1} parent=5 // pred_fallthru
      _
  $region6: #{conv_bn_leakyrelu.1} parent=0 // loop_footer
    %s13 = sadd.s32 1, %s9
  $region7: #{conv_bn_leakyrelu.1} parent=0 // loop_footer_branch
    %8 = sbr.rel target = $region3
  $region8: #{conv_bn_leakyrelu.1} parent=0 // loop_exit
    _

</llo_original>
